<compile_context>
chip_gen: v5e
topology: v5e:2x2
jax: 0.10.0
libtpu: 0.0.40
codegen_flags: <defaults>
</compile_context>

<pallas_src>
import math

import jax
import jax.numpy as jnp
from jax.experimental import pallas as pl
from jax.experimental.pallas import tpu as pltpu


def _round_up(x, m):
    return (x + m - 1) // m * m


def _cdiv(a, b):
    return (a + b - 1) // b


def _patch_embed_kernel(a_ref, w_ref, b_ref, o_ref):
    # a_ref: (tm, K)   patch rows (f32 or bf16)
    # w_ref: (K, tn)   projection weight tile (same dtype as a_ref)
    # b_ref: (1, tn)   bias tile (f32)
    # o_ref: (tm, tn)  output tile
    acc = jnp.dot(a_ref[...], w_ref[...], preferred_element_type=jnp.float32)
    o_ref[...] = (acc + b_ref[...]).astype(o_ref.dtype)


def _pick_tm(M, sublane, *, target=512):
    """Rows per tile.

    Preference order:
      1) small M         -> full-extent block (always layout-legal); when
         M >= 256, split in two so a v7x chip can use both TensorCores;
      2) divisor of M    -> no partial edge block and no padding copy;
      3) fall back to `target` with a cdiv grid (Pallas masks the edge block).
    """
    if M <= target:
        if M >= 256:
            return _round_up(_cdiv(M, 2), sublane)
        return M
    for cand in range(target, sublane - 1, -sublane):
        if M % cand == 0:
            return cand
    return target


def patch_embed_matmul(patches, weight_t, bias, *, out_dtype=None):
    """patches [M, K] @ weight_t [K, E] + bias[E] (f32)  ->  [M, E]."""
    M, K = patches.shape
    K2, E = weight_t.shape
    assert K == K2, (K, K2)
    if out_dtype is None:
        out_dtype = patches.dtype

    a_item = patches.dtype.itemsize
    w_item = weight_t.dtype.itemsize
    o_item = jnp.dtype(out_dtype).itemsize

    # Sublane granularity of the row tile: 8 rows for 4-byte dtypes, 16 for
    # 2-byte (bf16 packs two rows per sublane).
    sublane = 8 if a_item >= 4 else 16

    tm = _pick_tm(M, sublane)
    # Keep the double-buffered A tile within a sane VMEM budget.
    while tm > sublane and 2 * tm * K * a_item > 12 * 1024 * 1024:
        tm = max(sublane, (tm // 2) // sublane * sublane)

    # Column tile: keep the whole weight (and bias) resident in VMEM whenever
    # it is small (typical PatchEmbed sizes).  Constant block index -> a
    # single DMA for the weight, full-width output stores, 1-wide E grid axis.
    if K * E * w_item <= 6 * 1024 * 1024:
        tn = E
    else:
        tn = max(128, (4 * 1024 * 1024 // (K * w_item)) // 128 * 128)
        tn = min(tn, _round_up(E, 128))

    bias2 = bias.reshape(1, E).astype(jnp.float32)

    grid = (_cdiv(M, tm), _cdiv(E, tn))

    # Actual double-buffered VMEM footprint (+ slack), capped for v7x (64 MiB
    # per TensorCore -- never request the 48 MiB the old version asked for).
    need = 2 * (tm * K * a_item + K * tn * w_item + tn * 4 + tm * tn * o_item)
    vmem_limit = int(min(32 * 1024 * 1024, max(4 * 1024 * 1024, 2 * need)))

    cost = pl.CostEstimate(
        flops=2 * M * K * E,
        transcendentals=0,
        bytes_accessed=(M * K * a_item + K * E * w_item + E * 4
                        + M * E * o_item),
    )

    return pl.pallas_call(
        _patch_embed_kernel,
        out_shape=jax.ShapeDtypeStruct((M, E), out_dtype),
        grid_spec=pltpu.PrefetchScalarGridSpec(
            num_scalar_prefetch=0,
            grid=grid,
            in_specs=[
                pl.BlockSpec((tm, K), lambda i, j: (i, 0)),   # patch rows
                pl.BlockSpec((K, tn), lambda i, j: (0, j)),   # weight (resident if tn == E)
                pl.BlockSpec((1, tn), lambda i, j: (0, j)),   # bias
            ],
            out_specs=pl.BlockSpec((tm, tn), lambda i, j: (i, j)),
        ),
        compiler_params=pltpu.CompilerParams(
            dimension_semantics=("parallel", "parallel"),
            vmem_limit_bytes=vmem_limit,
        ),
        cost_estimate=cost,
    )(patches, weight_t, bias2)


def patch_embed_3d(x, weight, bias, patch_size, *, compute_dtype=None,
                   out_dtype=None):
    """Forward pass of PatchEmbed3D (norm_layer=None -> Identity).

    x:      [B, C, D, H, W]
    weight: [E, C, pd, ph, pw]  (Conv3d weight)
    bias:   [E]
    compute_dtype: None (use x.dtype) or e.g. jnp.bfloat16.  bf16 halves the
        HBM bytes of the patch slab / A tiles and runs the MXU in bf16 with
        f32 accumulation + f32 bias add -- recommended on v5e, v6e and v7x
        (the kernel is HBM-bandwidth bound on all three generations).
    out_dtype: dtype of the returned embeddings (default: x.dtype).
    returns [B, N, E] with N = (D//pd)*(H//ph)*(W//pw).
    """
    if isinstance(patch_size, (tuple, list)):
        pd, ph, pw = patch_size
    else:
        pd = ph = pw = patch_size
    B, C, D, H, W = x.shape
    E = weight.shape[0]
    assert D % pd == 0 and H % ph == 0 and W % pw == 0, (
        f"Input dimensions must be divisible by patch size. Got {x.shape} with "
        f"patch size {(pd, ph, pw)}")
    Dp, Hp, Wp = D // pd, H // ph, W // pw
    N = Dp * Hp * Wp
    if out_dtype is None:
        out_dtype = x.dtype

    if compute_dtype is not None:
        # Cast *before* the patch-extraction transpose so the single
        # materialized re-laid-out copy of x costs half the HBM bytes.
        x = x.astype(compute_dtype)
        weight = weight.astype(compute_dtype)

    # --- Optional K alignment (K = C*pd*ph*pw) to 128 via channel padding. ---
    # Only when the extra HBM bytes are small (<= 12.5%): the kernel is
    # HBM-bound, so masked lane loads beat inflating the dominant A stream.
    pvol = pd * ph * pw
    K = C * pvol
    if K % 128 != 0:
        step = 128 // math.gcd(pvol, 128)          # channel step for alignment
        C_pad = _round_up(C, step)
        if (C_pad - C) * pvol * 8 <= K:
            x = jnp.pad(x, ((0, 0), (0, C_pad - C), (0, 0), (0, 0), (0, 0)))
            weight = jnp.pad(
                weight, ((0, 0), (0, C_pad - C), (0, 0), (0, 0), (0, 0)))
            C = C_pad
            K = C * pvol

    # --- Patch extraction: one XLA copy (cast folded in). --------------------
    # TODO(synk): fuse this into the kernel (memory_space=pl.ANY + strided
    # pltpu.make_async_copy into a VMEM staging buffer) to remove the
    # materialized patch slab in HBM.
    xr = x.reshape(B, C, Dp, pd, Hp, ph, Wp, pw)
    # rows ordered (b, d', h', w'); K ordered (C, kd, kh, kw) to match Conv3d
    # weight flattening.
    xr = jnp.transpose(xr, (0, 2, 4, 6, 1, 3, 5, 7))
    patches = xr.reshape(B * N, K)

    # Weight [E, C, pd, ph, pw] -> [K, E]; bias kept in f32 for the epilogue.
    w_t = weight.reshape(E, K).T
    b_f32 = bias.astype(jnp.float32)

    out = patch_embed_matmul(patches, w_t, b_f32, out_dtype=out_dtype)
    return out.reshape(B, N, E)


if __name__ == "__main__":
    # Small, shape-consistent example (norm_layer=None -> Identity).
    B, C, D, H, W = 2, 4, 8, 8, 8
    patch_size = 4
    embed_dim = 32

    key = jax.random.PRNGKey(0)
    kx, kw, kb = jax.random.split(key, 3)

    x = jax.random.normal(kx, (B, C, D, H, W), dtype=jnp.float32)
    fan_in = C * patch_size ** 3
    bound = 1.0 / (fan_in ** 0.5)
    weight = jax.random.uniform(
        kw, (embed_dim, C, patch_size, patch_size, patch_size),
        minval=-bound, maxval=bound, dtype=jnp.float32)
    bias = jax.random.uniform(
        kb, (embed_dim,), minval=-bound, maxval=bound, dtype=jnp.float32)

    # f32 compute path (exact module semantics).
    out = patch_embed_3d(x, weight, bias, patch_size)
    out = jax.block_until_ready(out)

    # Pure-JAX reference (lax conv == Conv3d with stride == kernel).
    ref = jax.lax.conv_general_dilated(
        x, weight,
        window_strides=(patch_size,) * 3,
        padding="VALID",
        dimension_numbers=("NCDHW", "OIDHW", "NCDHW"),
    ) + bias.reshape(1, embed_dim, 1, 1, 1)
    ref = ref.reshape(B, embed_dim, -1).transpose(0, 2, 1)

    n_patches = (D // patch_size) * (H // patch_size) * (W // patch_size)
    assert out.shape == (B, n_patches, embed_dim)
    assert jnp.allclose(out, ref, atol=1e-4, rtol=1e-4)

    # bf16 compute path (halves patch-slab/A-tile HBM bytes; f32 accumulation).
    out_bf16 = patch_embed_3d(x, weight, bias, patch_size,
                              compute_dtype=jnp.bfloat16)
    out_bf16 = jax.block_until_ready(out_bf16)
    assert out_bf16.shape == (B, n_patches, embed_dim)
    assert out_bf16.dtype == x.dtype
    assert jnp.allclose(out_bf16, ref, atol=1e-1, rtol=1e-1)

    print("KERNEL_OK")
</pallas_src>

<mosaic_0001>
module attributes {stable_mosaic.version = 11 : i64} {
  func.func @_patch_embed_kernel(%arg0: i32, %arg1: i32, %arg2: memref<16x256xf32, #tpu.memory_space<vmem>>, %arg3: memref<256x32xf32, #tpu.memory_space<vmem>>, %arg4: memref<1x32xf32, #tpu.memory_space<vmem>>, %arg5: memref<16x32xf32, #tpu.memory_space<vmem>>) attributes {dimension_semantics = [#tpu.dimension_semantics<parallel>, #tpu.dimension_semantics<parallel>], iteration_bounds = array<i64: 1, 1>, scalar_prefetch = 0 : i64, scratch_operands = 0 : i64, tpu.core_type = #tpu.core_type<tc>, window_params = [{transform_indices = @transform_0, window_bounds = array<i64: 16, 256>}, {transform_indices = @transform_1, window_bounds = array<i64: 256, 32>}, {transform_indices = @transform_2, window_bounds = array<i64: 1, 32>}, {transform_indices = @transform_3, window_bounds = array<i64: 16, 32>}]} {
    %c0 = arith.constant 0 : index
    %c0_0 = arith.constant 0 : index
    %0 = vector.load %arg2[%c0, %c0_0] : memref<16x256xf32, #tpu.memory_space<vmem>>, vector<16x256xf32>
    %c0_1 = arith.constant 0 : index
    %c0_2 = arith.constant 0 : index
    %1 = vector.load %arg3[%c0_1, %c0_2] : memref<256x32xf32, #tpu.memory_space<vmem>>, vector<256x32xf32>
    %cst = arith.constant dense<0.000000e+00> : vector<16x32xf32>
    %2 = tpu.matmul %0, %1, %cst {dimension_numbers = #tpu.dot_dimension_numbers<[1], [0], [0], [1], [0, 0, 1, 1], [], []>} : vector<16x256xf32>, vector<256x32xf32>, vector<16x32xf32> -> vector<16x32xf32>
    %c0_3 = arith.constant 0 : index
    %c0_4 = arith.constant 0 : index
    %3 = vector.load %arg4[%c0_3, %c0_4] : memref<1x32xf32, #tpu.memory_space<vmem>>, vector<1x32xf32>
    %4 = vector.broadcast %3 : vector<1x32xf32> to vector<16x32xf32>
    %5 = arith.addf %2, %4 : vector<16x32xf32>
    %c0_5 = arith.constant 0 : index
    %c0_6 = arith.constant 0 : index
    %6 = vector.load %arg5[%c0_5, %c0_6] : memref<16x32xf32, #tpu.memory_space<vmem>>, vector<16x32xf32>
    tpu.vector_store %arg5[%c0_5, %c0_6], %5 {strides = array<i32>} : memref<16x32xf32, #tpu.memory_space<vmem>>, vector<16x32xf32>,
    return
  }
  func.func @transform_0(%arg0: i32, %arg1: i32) -> (i32, i32) {
    %c0_i32 = arith.constant 0 : i32
    %c0_i32_0 = arith.constant 0 : i32
    return %arg0, %c0_i32 : i32, i32
  }
  func.func @transform_1(%arg0: i32, %arg1: i32) -> (i32, i32) {
    %c0_i32 = arith.constant 0 : i32
    %c0_i32_0 = arith.constant 0 : i32
    return %c0_i32, %arg1 : i32, i32
  }
  func.func @transform_2(%arg0: i32, %arg1: i32) -> (i32, i32) {
    %c0_i32 = arith.constant 0 : i32
    %c0_i32_0 = arith.constant 0 : i32
    return %c0_i32, %arg1 : i32, i32
  }
  func.func @transform_3(%arg0: i32, %arg1: i32) -> (i32, i32) {
    %c0_i32 = arith.constant 0 : i32
    return %arg0, %arg1 : i32, i32
  }
}

</mosaic_0001>

<llo_original>
// kernel: tpu_custom_call.1
$region0: #{tpu_custom_call.1}
  #allocation0 [shape = 'u32[]', space=smem, size = 0x4, offset = 0x4, fixed_abs, tag = 'smem constant byte address 0x4 - core index']
  #allocation1 [shape = 'u32[72,128]{1,0:T(1,128)}', space=vmem, size = 0x9000, scoped, tag = 'internal scratch']
  %s0 = inlined_call_operand.vmem [shape: f32[16,256], index: 0, kind: input, shape index: {}]
  %s1 = inlined_call_operand.vmem [shape: f32[256,32], index: 1, kind: input, shape index: {}]
  %s2 = inlined_call_operand.vmem [shape: f32[1,32], index: 2, kind: input, shape index: {}]
  %s3 = inlined_call_operand.hbm [shape: f32[16,32], index: 3, kind: output, shape index: {}]
  %s4 = sld [smem:[#allocation0]]
  $region22: #{tpu_custom_call.1} parent=0
    _
  %s6 = ssub.s32 1, %s4
  %s7 = scalar_select 0, %s6, %s4
  $region1: #{tpu_custom_call.1} parent=0
    #allocation2 [shape = 'u8[8192]{0}', space=vmem, size = 0x2000, scoped, tag = 'output window, operand 0, single buffered']
    #allocation3 [shape = 's32[1]{0}', space=sflag, size = 0x4, scoped, tag = 'scoped memory for tpu_custom_call.1']
    %8 = vsyncpa [#allocation3], 0
    // Predicated region
    $region2: #{tpu_custom_call.1} parent=1 // pred_check
      _
    $region3: #{tpu_custom_call.1} parent=1 // pred_check_branch
      %10 = sbr.rel (0) target = $region5
    $region4: #{tpu_custom_call.1} parent=1 // pred_region
      _
    $region5: #{tpu_custom_call.1} parent=1 // pred_fallthru
      _
    // Predicated region
    $region6: #{tpu_custom_call.1} parent=1 // pred_check
      _
    $region7: #{tpu_custom_call.1} parent=1 // pred_check_branch
      %12 = sbr.rel (0) target = $region9
    $region8: #{tpu_custom_call.1} parent=1 // pred_region
      _
    $region9: #{tpu_custom_call.1} parent=1 // pred_fallthru
      _
    // Predicated region
    $region10: #{tpu_custom_call.1} parent=1 // pred_check
      _
    $region11: #{tpu_custom_call.1} parent=1 // pred_check_branch
      %14 = sbr.rel (0) target = $region13
    $region12: #{tpu_custom_call.1} parent=1 // pred_region
      _
    $region13: #{tpu_custom_call.1} parent=1 // pred_fallthru
      _
    %v15 = vld [vmem:[%s0] sm:$0xff]
    %v16 = vld [vmem:[%s0 + $0x8] sm:$0xff]
    %v17 = vld [vmem:[%s0 + $0x10] sm:$0xff]
    %v18 = vld [vmem:[%s0 + $0x18] sm:$0xff]
    %v19 = vld [vmem:[%s1] sm:$0xff]
    %v20 = vld [vmem:[%s1 + $0x8] sm:$0xff]
    %v21 = vld [vmem:[%s1 + $0x10] sm:$0xff]
    %v22 = vld [vmem:[%s1 + $0x18] sm:$0xff]
    %v23 = vld [vmem:[%s1 + $0x20] sm:$0xff]
    %v24 = vld [vmem:[%s1 + $0x28] sm:$0xff]
    %v25 = vld [vmem:[%s1 + $0x30] sm:$0xff]
    %v26 = vld [vmem:[%s1 + $0x38] sm:$0xff]
    %v27 = vld [vmem:[%s1 + $0x40] sm:$0xff]
    %v28 = vld [vmem:[%s1 + $0x48] sm:$0xff]
    %v29 = vld [vmem:[%s1 + $0x50] sm:$0xff]
    %v30 = vld [vmem:[%s1 + $0x58] sm:$0xff]
    %v31 = vld [vmem:[%s1 + $0x60] sm:$0xff]
    %v32 = vld [vmem:[%s1 + $0x68] sm:$0xff]
    %v33 = vld [vmem:[%s1 + $0x70] sm:$0xff]
    %v34 = vld [vmem:[%s1 + $0x78] sm:$0xff]
    %v35 = vld [vmem:[%s1 + $0x80] sm:$0xff]
    %v36 = vld [vmem:[%s1 + $0x88] sm:$0xff]
    %v37 = vld [vmem:[%s1 + $0x90] sm:$0xff]
    %v38 = vld [vmem:[%s1 + $0x98] sm:$0xff]
    %v39 = vld [vmem:[%s1 + $0xa0] sm:$0xff]
    %v40 = vld [vmem:[%s1 + $0xa8] sm:$0xff]
    %v41 = vld [vmem:[%s1 + $0xb0] sm:$0xff]
    %v42 = vld [vmem:[%s1 + $0xb8] sm:$0xff]
    %v43 = vld [vmem:[%s1 + $0xc0] sm:$0xff]
    %v44 = vld [vmem:[%s1 + $0xc8] sm:$0xff]
    %v45 = vld [vmem:[%s1 + $0xd0] sm:$0xff]
    %v46 = vld [vmem:[%s1 + $0xd8] sm:$0xff]
    %v47 = vld [vmem:[%s1 + $0xe0] sm:$0xff]
    %v48 = vld [vmem:[%s1 + $0xe8] sm:$0xff]
    %v49 = vld [vmem:[%s1 + $0xf0] sm:$0xff]
    %v50 = vld [vmem:[%s1 + $0xf8] sm:$0xff]
    %v51 = vld [vmem:[%s2] sm:$0x1]
    %v53 = vperm.slane %v51, 0
    %55 = vmatpush.msra.mxu0 %v34
    %56 = vmatpush.msra.mxu0 %v33
    %57 = vmatpush.msra.mxu0 %v32
    %58 = vmatpush.msra.mxu0 %v31
    %59 = vmatpush.msra.mxu0 %v30
    %60 = vmatpush.msra.mxu0 %v29
    %61 = vmatpush.msra.mxu0 %v28
    %62 = vmatpush.msra.mxu0 %v27
    %63 = vmatpush.msra.mxu0 %v26
    %64 = vmatpush.msra.mxu0 %v25
    %65 = vmatpush.msra.mxu0 %v24
    %66 = vmatpush.msra.mxu0 %v23
    %67 = vmatpush.msra.mxu0 %v22
    %68 = vmatpush.msra.mxu0 %v21
    %69 = vmatpush.msra.mxu0 %v20
    %70 = vmatpush.msra.mxu0 %v19
    %71 = vmatmul.f32.gmra.mxu0 %v15
    %v72 = vpop.f32.mrf.mxu0
    %v73 = vadd.f32 %v53, %v72
    %74 = vmatmul.f32.gmra.mxu0 %v17
    %v75 = vpop.f32.mrf.mxu0
    %v76 = vadd.f32 %v53, %v75
    %77 = vdwg.mxu0
    %78 = vmatpush.msra.mxu0 %v50
    %79 = vmatpush.msra.mxu0 %v49
    %80 = vmatpush.msra.mxu0 %v48
    %81 = vmatpush.msra.mxu0 %v47
    %82 = vmatpush.msra.mxu0 %v46
    %83 = vmatpush.msra.mxu0 %v45
    %84 = vmatpush.msra.mxu0 %v44
    %85 = vmatpush.msra.mxu0 %v43
    %86 = vmatpush.msra.mxu0 %v42
    %87 = vmatpush.msra.mxu0 %v41
    %88 = vmatpush.msra.mxu0 %v40
    %89 = vmatpush.msra.mxu0 %v39
    %90 = vmatpush.msra.mxu0 %v38
    %91 = vmatpush.msra.mxu0 %v37
    %92 = vmatpush.msra.mxu0 %v36
    %93 = vmatpush.msra.mxu0 %v35
    %94 = vmatmul.f32.gmra.mxu0 %v16
    %v95 = vpop.f32.mrf.mxu0
    %v96 = vadd.f32 %v73, %v95
    %97 = vmatmul.f32.gmra.mxu0 %v18
    %v98 = vpop.f32.mrf.mxu0
    %v99 = vadd.f32 %v76, %v98
    %100 = vdwg.mxu0
    %vm101 = vcmask 261120
    %102 = vst.msk [vmem:[#allocation2] sm:$0xff] %vm101, %v96
    %103 = vst.msk [vmem:[#allocation2 + $0x8] sm:$0xff] %vm101, %v99
    // Predicated region
    $region14: #{tpu_custom_call.1} parent=1 // pred_check
      _
    $region15: #{tpu_custom_call.1} parent=1 // pred_check_branch
      %105 = sbr.rel (0) target = $region17
    $region16: #{tpu_custom_call.1} parent=1 // pred_region
      %107 = vsyncadd [#allocation3], 0
      %s108 = sshll.u32 [#allocation2], 4
      %s109 = int_to_ptr.vmem [resolvable:$true] %s108
      %s110 = sshll.u32 %s3, 4
      %s111 = int_to_ptr.hbm [resolvable:$true] %s110
      %116 = dma.vmem_to_hbm [thread:$0]  %s109, 256, %s111, [#allocation3], 128, 128, 8
    $region17: #{tpu_custom_call.1} parent=1 // pred_fallthru
      _
    // Predicated region
    $region18: #{tpu_custom_call.1} parent=1 // pred_check
      _
    $region19: #{tpu_custom_call.1} parent=1 // pred_check_branch
      %118 = sbr.rel (0) target = $region21
    $region20: #{tpu_custom_call.1} parent=1 // pred_region
      %120 = dma.done [#allocation3], 256
    $region21: #{tpu_custom_call.1} parent=1 // pred_fallthru
      _
    %121 = vsyncpa [#allocation3], 1

</llo_original>
